<compile_context>
chip_gen: v5e
topology: v5e:2x2
jax: 0.10.0
libtpu: 0.0.40
codegen_flags: <defaults>
</compile_context>

<pallas_src>
import jax
import jax.numpy as jnp
from jax.experimental import pallas as pl
from jax.experimental.pallas import tpu as pltpu


# ---------------------------------------------------------------------------
# Kernels (x_ref: (tn, tk), w_ref: (tk, to), b_ref: (1, to), o_ref: (tn, to))
# Grid layout: (n_tiles, out_tiles, E, k_tiles)  -> K (reduction) axis is 3.
# ---------------------------------------------------------------------------

def _single_k_kernel(x_ref, w_ref, b_ref, o_ref):
    # Whole K in one block: no accumulator needed.
    acc = jnp.dot(x_ref[...], w_ref[...], preferred_element_type=jnp.float32)
    o_ref[...] = (acc + b_ref[...]).astype(o_ref.dtype)


def _acc_into_out_kernel(x_ref, w_ref, b_ref, o_ref):
    # Output dtype is f32: accumulate directly into the revisited output block
    # (out_specs returns the same block index across the K axis).
    k = pl.program_id(3)

    @pl.when(k == 0)
    def _():
        o_ref[...] = jnp.zeros_like(o_ref)

    o_ref[...] += jnp.dot(x_ref[...], w_ref[...],
                          preferred_element_type=jnp.float32)

    @pl.when(k == pl.num_programs(3) - 1)
    def _():
        o_ref[...] += b_ref[...].astype(jnp.float32)


def _acc_scratch_kernel(x_ref, w_ref, b_ref, o_ref, acc_ref):
    # Narrow output dtype: keep a f32 VMEM scratch accumulator.
    k = pl.program_id(3)

    @pl.when(k == 0)
    def _():
        acc_ref[...] = jnp.zeros_like(acc_ref)

    acc_ref[...] += jnp.dot(x_ref[...], w_ref[...],
                            preferred_element_type=jnp.float32)

    @pl.when(k == pl.num_programs(3) - 1)
    def _():
        o_ref[...] = (acc_ref[...] + b_ref[...]).astype(o_ref.dtype)


# ---------------------------------------------------------------------------
# Tile selection helpers
# ---------------------------------------------------------------------------

def _pick_tile_cdiv(dim, target, align):
    """Tile for an axis that tolerates partial trailing blocks (N / Out)."""
    if dim <= target:
        return dim
    return max(align, (target // align) * align)


def _pick_divisor_tile(dim, target, align):
    """Largest multiple of `align` <= target that divides `dim`; falls back to
    the full dim (always divides).  Used for the K axis, where partial blocks
    would feed padding garbage into the accumulator."""
    if dim <= target:
        return dim
    t = (target // align) * align
    while t >= align:
        if dim % t == 0:
            return t
        t -= align
    return dim


def _itemsize(dt):
    return jnp.dtype(dt).itemsize


# ---------------------------------------------------------------------------
# Wrapper
# ---------------------------------------------------------------------------

def ensemble_linear(x, weight, bias, *, block_n=None, block_out=None,
                    block_k=None):
    """Forward pass of EnsembleLinear.

    x:      (N, In) or (E, N, In)
    weight: (E, In, Out)
    bias:   (E, 1, Out)
    returns (E, N, Out)
    """
    e, in_f, out_f = weight.shape
    assert bias.shape == (e, 1, out_f), "bias must be (E, 1, Out)"
    out_dtype = jnp.result_type(x.dtype, weight.dtype, bias.dtype)

    if x.ndim == 2:
        n, xin = x.shape
        assert xin == in_f
    else:
        assert x.ndim == 3 and x.shape[0] == e and x.shape[2] == in_f
        n = x.shape[1]

    # ---- tile selection ---------------------------------------------------
    # Dtype-aware sublane alignment for the N tile (bf16 packs 16, int8 32).
    align_n = max(8, 32 // _itemsize(x.dtype))

    tn = int(block_n) if block_n is not None else _pick_tile_cdiv(n, 512, align_n)
    to = int(block_out) if block_out is not None else _pick_tile_cdiv(out_f, 512, 128)
    if block_k is not None:
        tk = int(block_k)
        assert in_f % tk == 0, (
            "block_k must divide in_features exactly (padded K tails would "
            "corrupt the accumulator)")
    else:
        tk = _pick_divisor_tile(in_f, 1024, 128)

    def _footprint(tn_, tk_, to_):
        gk_ = in_f // tk_
        with_scratch = gk_ > 1 and out_dtype != jnp.float32
        per_step = (tn_ * tk_ * _itemsize(x.dtype)
                    + tk_ * to_ * _itemsize(weight.dtype)
                    + to_ * _itemsize(bias.dtype)
                    + tn_ * to_ * _itemsize(out_dtype))
        total = 2 * per_step                      # double-buffered windows
        if with_scratch:
            total += tn_ * to_ * 4
        return total

    # Shrink auto-chosen tiles toward a cross-generation-safe VMEM budget
    # (well under v7x's 32 MiB scoped / 64 MiB physical).
    budget = 20 * 1024 * 1024
    for _ in range(16):
        if _footprint(tn, tk, to) <= budget:
            break
        if block_n is None and tn > align_n:
            tn = max(align_n, ((tn // 2) // align_n) * align_n)
            continue
        if block_out is None and to > 128 and out_f > 128:
            to = max(128, ((to // 2) // 128) * 128)
            continue
        if block_k is None:
            smaller = _pick_divisor_tile(in_f, max(128, tk // 2), 128)
            if smaller < tk:
                tk = smaller
                continue
        break

    fp = _footprint(tn, tk, to)
    # Raise the scoped-VMEM limit explicitly when bigger tiles need it
    # (v5e default is only 16 MiB); leave the default otherwise.
    vmem_limit = int(fp + 6 * 1024 * 1024) if fp > 12 * 1024 * 1024 else None

    gn = pl.cdiv(n, tn)
    gj = pl.cdiv(out_f, to)
    gk = in_f // tk
    # Leading parallel axis = n_tiles (v7x 2-TC split); reduction axis last.
    # TODO(synk): for gn == gj == 1 on v7x, a flattened (n_tiles*E) leading
    # axis would balance E=7 across the 2 TensorCores better than 4/3.
    grid = (gn, gj, e, gk)

    if x.ndim == 2:
        # Shared input: every ensemble member reads the same (tn, tk) block.
        x_spec = pl.BlockSpec((tn, tk), lambda i, j, b, k: (i, k))
    else:
        x_spec = pl.BlockSpec((None, tn, tk), lambda i, j, b, k: (b, i, k))
    w_spec = pl.BlockSpec((None, tk, to), lambda i, j, b, k: (b, k, j))
    b_spec = pl.BlockSpec((None, 1, to), lambda i, j, b, k: (b, 0, j))
    o_spec = pl.BlockSpec((None, tn, to), lambda i, j, b, k: (b, i, j))

    if gk == 1:
        kernel, scratch = _single_k_kernel, []
    elif out_dtype == jnp.float32:
        kernel, scratch = _acc_into_out_kernel, []
    else:
        kernel, scratch = _acc_scratch_kernel, [pltpu.VMEM((tn, to), jnp.float32)]

    flops = 2 * e * n * in_f * out_f + e * n * out_f
    bytes_accessed = (x.size * _itemsize(x.dtype)
                      + weight.size * _itemsize(weight.dtype)
                      + bias.size * _itemsize(bias.dtype)
                      + e * n * out_f * _itemsize(out_dtype))

    return pl.pallas_call(
        kernel,
        out_shape=jax.ShapeDtypeStruct((e, n, out_f), out_dtype),
        grid_spec=pltpu.PrefetchScalarGridSpec(
            num_scalar_prefetch=0,
            grid=grid,
            in_specs=[x_spec, w_spec, b_spec],
            out_specs=o_spec,
            scratch_shapes=scratch,
        ),
        compiler_params=pltpu.CompilerParams(
            dimension_semantics=("parallel", "parallel", "parallel",
                                 "arbitrary"),
            vmem_limit_bytes=vmem_limit),
        cost_estimate=pl.CostEstimate(
            flops=int(flops), transcendentals=0,
            bytes_accessed=int(bytes_accessed)),
    )(x, weight, bias)


def init_params(key, in_features, out_features, ensemble_size=7):
    """Deterministic init matching the PyTorch module:
    weight ~ trunc_normal(std=1/(2*sqrt(in)), truncated at +/-2 std), bias = 0."""
    std = 1.0 / (2.0 * in_features ** 0.5)
    w = jax.random.truncated_normal(
        key, -2.0, 2.0, (ensemble_size, in_features, out_features), jnp.float32
    ) * std
    b = jnp.zeros((ensemble_size, 1, out_features), jnp.float32)
    return w, b


# TODO(synk): set_select / update_save are host-side parameter bookkeeping with
# no forward compute; the equivalent here is slicing weight/bias before calling
# ensemble_linear.

if __name__ == "__main__":
    e = 7
    key = jax.random.PRNGKey(0)
    keys = jax.random.split(key, 6)
    hp = jax.lax.Precision.HIGHEST

    # --- small case: In = Out = 32, batch = 8 (grid (1,1,E,1), single-K) ----
    in_f, out_f, batch = 32, 32, 8
    w1, b1 = init_params(keys[0], in_f, out_f, e)

    # 2-D input (shared across ensemble): squeezed-E grid, no transposes.
    x2 = jax.random.normal(keys[1], (batch, in_f), jnp.float32)
    out2 = ensemble_linear(x2, w1, b1)
    jax.block_until_ready(out2)
    ref2 = jnp.einsum("ij,bjk->bik", x2, w1, precision=hp) + b1
    assert out2.shape == (e, batch, out_f)
    assert jnp.allclose(out2, ref2, atol=1e-4, rtol=1e-4)

    # 3-D input (per-member inputs).
    x3 = jax.random.normal(keys[2], (e, batch, in_f), jnp.float32)
    out3 = ensemble_linear(x3, w1, b1)
    jax.block_until_ready(out3)
    ref3 = jnp.einsum("bij,bjk->bik", x3, w1, precision=hp) + b1
    assert out3.shape == (e, batch, out_f)
    assert jnp.allclose(out3, ref3, atol=1e-4, rtol=1e-4)

    # --- bigger-In case: exercise K-tiling (accumulate into f32 output) -----
    in_f2, out_f2 = 256, 32
    w2, b2 = init_params(keys[3], in_f2, out_f2, e)

    x2b = jax.random.normal(keys[4], (batch, in_f2), jnp.float32)
    out2b = ensemble_linear(x2b, w2, b2, block_k=128)     # 2 K-steps, 2-D path
    jax.block_until_ready(out2b)
    ref2b = jnp.einsum("ij,bjk->bik", x2b, w2, precision=hp) + b2
    assert out2b.shape == (e, batch, out_f2)
    assert jnp.allclose(out2b, ref2b, atol=1e-4, rtol=1e-4)

    x3b = jax.random.normal(keys[5], (e, batch, in_f2), jnp.float32)
    out3b = ensemble_linear(x3b, w2, b2, block_k=128)     # 2 K-steps, 3-D path
    jax.block_until_ready(out3b)
    ref3b = jnp.einsum("bij,bjk->bik", x3b, w2, precision=hp) + b2
    assert out3b.shape == (e, batch, out_f2)
    assert jnp.allclose(out3b, ref3b, atol=1e-4, rtol=1e-4)

    # --- bf16 case: exercise the scratch-accumulator kernel -----------------
    xb, wb, bb = (x3b.astype(jnp.bfloat16), w2.astype(jnp.bfloat16),
                  b2.astype(jnp.bfloat16))
    outb = ensemble_linear(xb, wb, bb, block_k=128)
    jax.block_until_ready(outb)
    refb = (jnp.einsum("bij,bjk->bik", xb.astype(jnp.float32),
                       wb.astype(jnp.float32), precision=hp)
            + bb.astype(jnp.float32)).astype(jnp.bfloat16)
    assert outb.dtype == jnp.bfloat16 and outb.shape == (e, batch, out_f2)
    assert jnp.allclose(outb.astype(jnp.float32), refb.astype(jnp.float32),
                        atol=2e-2, rtol=2e-2)

    print("KERNEL_OK")
</pallas_src>

<mosaic_0001>
module attributes {stable_mosaic.version = 11 : i64} {
  func.func @_single_k_kernel(%arg0: i32, %arg1: i32, %arg2: i32, %arg3: i32, %arg4: memref<8x32xf32, #tpu.memory_space<vmem>>, %arg5: memref<1x32x32xf32, #tpu.memory_space<vmem>>, %arg6: memref<1x1x32xf32, #tpu.memory_space<vmem>>, %arg7: memref<1x8x32xf32, #tpu.memory_space<vmem>>) attributes {dimension_semantics = [#tpu.dimension_semantics<parallel>, #tpu.dimension_semantics<parallel>, #tpu.dimension_semantics<parallel>, #tpu.dimension_semantics<arbitrary>], iteration_bounds = array<i64: 1, 1, 7, 1>, scalar_prefetch = 0 : i64, scratch_operands = 0 : i64, tpu.core_type = #tpu.core_type<tc>, window_params = [{transform_indices = @transform_0, window_bounds = array<i64: 8, 32>}, {transform_indices = @transform_1, window_bounds = array<i64: 1, 32, 32>}, {transform_indices = @transform_2, window_bounds = array<i64: 1, 1, 32>}, {transform_indices = @transform_3, window_bounds = array<i64: 1, 8, 32>}]} {
    %c0 = arith.constant 0 : index
    %c0_0 = arith.constant 0 : index
    %0 = vector.load %arg4[%c0, %c0_0] : memref<8x32xf32, #tpu.memory_space<vmem>>, vector<8x32xf32>
    %c0_1 = arith.constant 0 : index
    %c0_2 = arith.constant 0 : index
    %c0_3 = arith.constant 0 : index
    %1 = vector.load %arg5[%c0_1, %c0_2, %c0_3] : memref<1x32x32xf32, #tpu.memory_space<vmem>>, vector<1x32x32xf32>
    %2 = vector.shape_cast %1 : vector<1x32x32xf32> to vector<32x32xf32>
    %cst = arith.constant dense<0.000000e+00> : vector<8x32xf32>
    %3 = tpu.matmul %0, %2, %cst {dimension_numbers = #tpu.dot_dimension_numbers<[1], [0], [0], [1], [0, 0, 1, 1], [], []>} : vector<8x32xf32>, vector<32x32xf32>, vector<8x32xf32> -> vector<8x32xf32>
    %c0_4 = arith.constant 0 : index
    %c0_5 = arith.constant 0 : index
    %c0_6 = arith.constant 0 : index
    %4 = vector.load %arg6[%c0_4, %c0_5, %c0_6] : memref<1x1x32xf32, #tpu.memory_space<vmem>>, vector<1x1x32xf32>
    %5 = vector.shape_cast %4 : vector<1x1x32xf32> to vector<1x32xf32>
    %6 = vector.broadcast %5 : vector<1x32xf32> to vector<8x32xf32>
    %7 = arith.addf %3, %6 : vector<8x32xf32>
    %c0_7 = arith.constant 0 : index
    %c0_8 = arith.constant 0 : index
    %c0_9 = arith.constant 0 : index
    %8 = vector.load %arg7[%c0_7, %c0_8, %c0_9] : memref<1x8x32xf32, #tpu.memory_space<vmem>>, vector<1x8x32xf32>
    %9 = vector.shape_cast %8 : vector<1x8x32xf32> to vector<8x32xf32>
    %10 = vector.shape_cast %7 : vector<8x32xf32> to vector<1x8x32xf32>
    tpu.vector_store %arg7[%c0_7, %c0_8, %c0_9], %10 {strides = array<i32>} : memref<1x8x32xf32, #tpu.memory_space<vmem>>, vector<1x8x32xf32>,
    return
  }
  func.func @transform_0(%arg0: i32, %arg1: i32, %arg2: i32, %arg3: i32) -> (i32, i32) {
    %c0_i32 = arith.constant 0 : i32
    return %arg0, %arg3 : i32, i32
  }
  func.func @transform_1(%arg0: i32, %arg1: i32, %arg2: i32, %arg3: i32) -> (i32, i32, i32) {
    %c0_i32 = arith.constant 0 : i32
    return %arg2, %arg3, %arg1 : i32, i32, i32
  }
  func.func @transform_2(%arg0: i32, %arg1: i32, %arg2: i32, %arg3: i32) -> (i32, i32, i32) {
    %c0_i32 = arith.constant 0 : i32
    %c0_i32_0 = arith.constant 0 : i32
    return %arg2, %c0_i32, %arg1 : i32, i32, i32
  }
  func.func @transform_3(%arg0: i32, %arg1: i32, %arg2: i32, %arg3: i32) -> (i32, i32, i32) {
    %c0_i32 = arith.constant 0 : i32
    return %arg2, %arg0, %arg1 : i32, i32, i32
  }
}

</mosaic_0001>

<llo_original>
// kernel: tpu_custom_call.1
$region0: #{tpu_custom_call.1}
  #allocation0 [shape = 'u32[]', space=smem, size = 0x4, offset = 0x4, fixed_abs, tag = 'smem constant byte address 0x4 - core index']
  #allocation1 [shape = 'u32[72,128]{1,0:T(1,128)}', space=vmem, size = 0x9000, scoped, tag = 'internal scratch']
  %s0 = inlined_call_operand.hbm [shape: f32[8,32], index: 0, kind: input, shape index: {}]
  %s1 = inlined_call_operand.hbm [shape: f32[7,32,32], index: 1, kind: input, shape index: {}]
  %s2 = inlined_call_operand.hbm [shape: f32[7,1,32], index: 2, kind: input, shape index: {}]
  %s3 = inlined_call_operand.hbm [shape: f32[7,8,32], index: 3, kind: output, shape index: {}]
  %s4 = sld [smem:[#allocation0]]
  $region57: #{tpu_custom_call.1} parent=0
    _
  %s6 = ssub.s32 1, %s4
  %s7 = scalar_select 0, %s6, %s4
  $region1: #{tpu_custom_call.1} parent=0
    #allocation2 [shape = 'u8[4096]{0}', space=vmem, size = 0x1000, scoped, tag = 'input window, operand 0, single buffered']
    #allocation3 [shape = 's32[2]{0}', space=sflag, size = 0x8, scoped, tag = 'scoped memory for tpu_custom_call.1']
    #allocation4 [shape = 's32[2]{0}', space=sflag, size = 0x8, scoped, tag = 'scoped memory for tpu_custom_call.1']
    #allocation5 [shape = 'u8[32768]{0}', space=vmem, size = 0x8000, scoped, tag = 'input window, operand 1']
    #allocation6 [shape = 's32[2]{0}', space=sflag, size = 0x8, scoped, tag = 'scoped memory for tpu_custom_call.1']
    #allocation7 [shape = 'u8[1024]{0}', space=vmem, size = 0x400, scoped, tag = 'input window, operand 2']
    #allocation8 [shape = 'u8[8192]{0}', space=vmem, size = 0x2000, scoped, tag = 'output window, operand 0']
    %8 = vsyncpa [#allocation3], 0
    %9 = vsyncpa [#allocation6], 0
    %s10 = scalar_lea.sflag [#allocation6], 1
    %11 = vsyncpa %s10, 0
    %12 = vsyncpa [#allocation4], 0
    %s13 = scalar_lea.sflag [#allocation4], 1
    %14 = vsyncpa %s13, 0
    loop: start=0, step=1, limit=9
    $region2: #{tpu_custom_call.1} parent=1 // loop_pre_header
      _
    $region3: #{tpu_custom_call.1} parent=1 // loop_header
      %s16 = sphi 0, %s20
      %p17 = scmp.ge.s32.totalorder %s16, 9
      %s23 = sphi 0, %s49
      %s24 = sphi 0, %s45
      %s25 = sphi 0, %s41
      %s26 = sphi 0, %s37
      %s27 = sphi 0, %s23
      %s28 = sphi 0, %s24
      %s29 = sphi 0, %s25
      %s30 = sphi 0, %s26
      %s31 = sphi 0, %s27
      %s32 = sphi 0, %s28
      %s33 = sphi 0, %s29
      %s34 = sphi 0, %s30
      %s54 = sphi 0, %s56
      %s57 = sphi 0, %s54
      %s58 = sphi 0, %s57
      %s74 = sphi 0, %s58
      %s84 = sphi 0, %s86
      %s87 = sphi 0, %s84
      %s88 = sphi 0, %s87
      %s104 = sphi 0, %s88
      %s112 = sphi 0, %s114
      %s115 = sphi 0, %s112
      %s116 = sphi 0, %s115
      %s132 = sphi 0, %s116
      %s142 = sphi 0, %s144
      %s145 = sphi 0, %s142
      %s146 = sphi 0, %s145
      %s162 = sphi 0, %s146
    $region4: #{tpu_custom_call.1} parent=1 // loop_header_branch
      %19 = sbr.rel (%p17) target = $region8
    $region5: #{tpu_custom_call.1} parent=1 // loop_body
      %s21 = ssub.s32 %s16, 1
      %s22 = ssub.s32 %s16, 2
      %s35 = sadd.s32 1, %s26
      %p36 = scmp.ge.s32.totalorder %s35, 1
      %s37 = scalar_select %p36, 0, %s35
      %s38 = sadd.s32 1, %s25
      %s39 = scalar_select %p36, %s38, %s25
      %p40 = scmp.ge.s32.totalorder %s39, 7
      %s41 = scalar_select %p40, 0, %s39
      %s42 = sadd.s32 1, %s24
      %s43 = scalar_select %p40, %s42, %s24
      %p44 = scmp.ge.s32.totalorder %s43, 1
      %s45 = scalar_select %p44, 0, %s43
      %s46 = sadd.s32 1, %s23
      %s47 = scalar_select %p44, %s46, %s23
      %p48 = scmp.ge.s32.totalorder %s47, 1
      %s49 = scalar_select %p48, 0, %s47
      %s50 = ssub.s32 %s23, %s49
      %s51 = ssub.s32 %s26, %s37
      %s52 = sor.u32 %s50, %s51
      %p53 = scmp.eq.s32.totalorder %s52, 0
      %s55 = sadd.s32 %s54, 1
      %s56 = scalar_select %p53, %s54, %s55
      %p59 = pneg %p53
      %p60 = scmp.eq.s32.totalorder %s16, 6
      %p61 = por %p59, %p60
      %p62 = scmp.ne.s32.totalorder %s54, %s57
      %p63 = scmp.eq.s32.totalorder %s16, 0
      %p64 = por %p62, %p63
      %p65 = scmp.ne.s32.totalorder %s54, %s57
      %p66 = scmp.eq.s32.totalorder %s21, 6
      %p67 = por %p65, %p66
      %p68 = scmp.ne.s32.totalorder %s57, %s58
      %p69 = scmp.eq.s32.totalorder %s21, 0
      %p70 = por %p68, %p69
      %p71 = scmp.ne.s32.totalorder %s57, %s58
      %p72 = scmp.eq.s32.totalorder %s22, 6
      %p73 = por %p71, %p72
      %p75 = scmp.ne.s32.totalorder %s58, %s74
      %p76 = scmp.eq.s32.totalorder %s22, 0
      %p77 = por %p75, %p76
      %s78 = ssub.s32 %s25, %s41
      %s79 = ssub.s32 %s26, %s37
      %s80 = sor.u32 %s78, %s79
      %s81 = ssub.s32 %s24, %s45
      %s82 = sor.u32 %s80, %s81
      %p83 = scmp.eq.s32.totalorder %s82, 0
      %s85 = sadd.s32 %s84, 1
      %s86 = scalar_select %p83, %s84, %s85
      %p89 = pneg %p83
      %p90 = scmp.eq.s32.totalorder %s16, 6
      %p91 = por %p89, %p90
      %p92 = scmp.ne.s32.totalorder %s84, %s87
      %p93 = scmp.eq.s32.totalorder %s16, 0
      %p94 = por %p92, %p93
      %p95 = scmp.ne.s32.totalorder %s84, %s87
      %p96 = scmp.eq.s32.totalorder %s21, 6
      %p97 = por %p95, %p96
      %p98 = scmp.ne.s32.totalorder %s87, %s88
      %p99 = scmp.eq.s32.totalorder %s21, 0
      %p100 = por %p98, %p99
      %p101 = scmp.ne.s32.totalorder %s87, %s88
      %p102 = scmp.eq.s32.totalorder %s22, 6
      %p103 = por %p101, %p102
      %p105 = scmp.ne.s32.totalorder %s88, %s104
      %p106 = scmp.eq.s32.totalorder %s22, 0
      %p107 = por %p105, %p106
      %s108 = ssub.s32 %s25, %s41
      %s109 = ssub.s32 %s24, %s45
      %s110 = sor.u32 %s108, %s109
      %p111 = scmp.eq.s32.totalorder %s110, 0
      %s113 = sadd.s32 %s112, 1
      %s114 = scalar_select %p111, %s112, %s113
      %p117 = pneg %p111
      %p118 = scmp.eq.s32.totalorder %s16, 6
      %p119 = por %p117, %p118
      %p120 = scmp.ne.s32.totalorder %s112, %s115
      %p121 = scmp.eq.s32.totalorder %s16, 0
      %p122 = por %p120, %p121
      %p123 = scmp.ne.s32.totalorder %s112, %s115
      %p124 = scmp.eq.s32.totalorder %s21, 6
      %p125 = por %p123, %p124
      %p126 = scmp.ne.s32.totalorder %s115, %s116
      %p127 = scmp.eq.s32.totalorder %s21, 0
      %p128 = por %p126, %p127
      %p129 = scmp.ne.s32.totalorder %s115, %s116
      %p130 = scmp.eq.s32.totalorder %s22, 6
      %p131 = por %p129, %p130
      %p133 = scmp.ne.s32.totalorder %s116, %s132
      %p134 = scmp.eq.s32.totalorder %s22, 0
      %p135 = por %p133, %p134
      %s136 = ssub.s32 %s25, %s41
      %s137 = ssub.s32 %s23, %s49
      %s138 = sor.u32 %s136, %s137
      %s139 = ssub.s32 %s24, %s45
      %s140 = sor.u32 %s138, %s139
      %p141 = scmp.eq.s32.totalorder %s140, 0
      %s143 = sadd.s32 %s142, 1
      %s144 = scalar_select %p141, %s142, %s143
      %p147 = pneg %p141
      %p148 = scmp.eq.s32.totalorder %s16, 6
      %p149 = por %p147, %p148
      %p150 = scmp.ne.s32.totalorder %s142, %s145
      %p151 = scmp.eq.s32.totalorder %s16, 0
      %p152 = por %p150, %p151
      %p153 = scmp.ne.s32.totalorder %s142, %s145
      %p154 = scmp.eq.s32.totalorder %s21, 6
      %p155 = por %p153, %p154
      %p156 = scmp.ne.s32.totalorder %s145, %s146
      %p157 = scmp.eq.s32.totalorder %s21, 0
      %p158 = por %p156, %p157
      %p159 = scmp.ne.s32.totalorder %s145, %s146
      %p160 = scmp.eq.s32.totalorder %s22, 6
      %p161 = por %p159, %p160
      %p163 = scmp.ne.s32.totalorder %s146, %s162
      %p164 = scmp.eq.s32.totalorder %s22, 0
      %p165 = por %p163, %p164
      %p166 = scmp.le.s32.totalorder 1, %s16
      %p167 = scmp.lt.s32.totalorder %s16, 8
      %p168 = pnand %p166, %p167
      %p169 = pneg %p168
      // Predicated region
      $region9: #{tpu_custom_call.1} parent=5 // pred_check
        _
      $region10: #{tpu_custom_call.1} parent=5 // pred_check_branch
        %171 = sbr.rel (%p168) target = $region12
      $region11: #{tpu_custom_call.1} parent=5 // pred_region
        %s172 = ssub.s32 %s16, 1
        // Predicated region
        $region13: #{tpu_custom_call.1} parent=11 // pred_check
          %p173 = pneg %p70
        $region14: #{tpu_custom_call.1} parent=11 // pred_check_branch
          %175 = sbr.rel (%p173) target = $region16
        $region15: #{tpu_custom_call.1} parent=11 // pred_region
          %177 = vsyncadd [#allocation3], 0
          %s178 = sadd.s32 %s30, %s27
          %s179 = smul.addr %s178, 8
          %s180 = scalar_lea.hbm %s0, %s179
          %s182 = sshll.u32 %s180, 4
          %s183 = int_to_ptr.hbm [resolvable:$true] %s182
          %s184 = sshll.u32 [#allocation2], 4
          %s185 = int_to_ptr.vmem [resolvable:$true] %s184
          %187 = dma.hbm_to_vmem [thread:$0]  %s183, 128, %s185, [#allocation3]
        $region16: #{tpu_custom_call.1} parent=11 // pred_fallthru
          _
      $region12: #{tpu_custom_call.1} parent=5 // pred_fallthru
        _
      %p188 = scmp.lt.s32.totalorder %s16, 7
      // Predicated region
      $region17: #{tpu_custom_call.1} parent=5 // pred_check
        %p189 = pneg %p188
      $region18: #{tpu_custom_call.1} parent=5 // pred_check_branch
        %191 = sbr.rel (%p189) target = $region20
      $region19: #{tpu_custom_call.1} parent=5 // pred_region
        // Predicated region
        $region21: #{tpu_custom_call.1} parent=19 // pred_check
          %p192 = pneg %p94
        $region22: #{tpu_custom_call.1} parent=19 // pred_check_branch
          %194 = sbr.rel (%p192) target = $region24
        $region23: #{tpu_custom_call.1} parent=19 // pred_region
          %s195 = sand.u32 %s16, 1
          %s196 = scalar_lea.sflag [#allocation6], %s195
          %s197 = sand.u32 %s84, 1
          %s198 = smul.addr %s197, 32
          %s199 = scalar_lea.vmem [#allocation5], %s198
          %s200 = smul.u32 4, %s26
          %202 = vsyncadd %s196, 0
          %s203 = sadd.s32 %s24, %s200
          %s204 = smul.addr %s25, 4
          %s205 = sadd.s32 %s203, %s204
          %s206 = smul.addr %s205, 8
          %s207 = scalar_lea.hbm %s1, %s206
          %s208 = sshll.u32 %s207, 4
          %s209 = int_to_ptr.hbm [resolvable:$true] %s208
          %s210 = sshll.u32 %s199, 4
          %s211 = int_to_ptr.vmem [resolvable:$true] %s210
          %216 = dma.hbm_to_vmem [thread:$0]  %s209, 512, %s211, %s196, 128, 128, 8
        $region24: #{tpu_custom_call.1} parent=19 // pred_fallthru
          _
        // Predicated region
        $region25: #{tpu_custom_call.1} parent=19 // pred_check
          %p217 = pneg %p122
        $region26: #{tpu_custom_call.1} parent=19 // pred_check_branch
          %219 = sbr.rel (%p217) target = $region28
        $region27: #{tpu_custom_call.1} parent=19 // pred_region
          %s220 = sand.u32 %s16, 1
          %s221 = scalar_lea.sflag [#allocation6], %s220
          %s222 = sand.u32 %s112, 1
          %s223 = scalar_lea.vmem [#allocation7], %s222
          %225 = vsyncadd %s221, 0
          %s226 = sadd.s32 %s24, %s25
          %s227 = scalar_lea.hbm %s2, %s226
          %s229 = sshll.u32 %s227, 4
          %s230 = int_to_ptr.hbm [resolvable:$true] %s229
          %s231 = sshll.u32 %s223, 4
          %s232 = int_to_ptr.vmem [resolvable:$true] %s231
          %234 = dma.hbm_to_vmem [thread:$0]  %s230, 16, %s232, %s221
        $region28: #{tpu_custom_call.1} parent=19 // pred_fallthru
          _
      $region20: #{tpu_custom_call.1} parent=5 // pred_fallthru
        _
      %p235 = scmp.le.s32.totalorder 1, %s16
      %p236 = scmp.lt.s32.totalorder %s16, 8
      %p237 = pnand %p235, %p236
      %p238 = pneg %p237
      // Predicated region
      $region29: #{tpu_custom_call.1} parent=5 // pred_check
        _
      $region30: #{tpu_custom_call.1} parent=5 // pred_check_branch
        %240 = sbr.rel (%p237) target = $region32
      $region31: #{tpu_custom_call.1} parent=5 // pred_region
        %s241 = ssub.s32 %s16, 1
        // Predicated region
        $region33: #{tpu_custom_call.1} parent=31 // pred_check
          %p242 = pneg %p70
        $region34: #{tpu_custom_call.1} parent=31 // pred_check_branch
          %244 = sbr.rel (%p242) target = $region36
        $region35: #{tpu_custom_call.1} parent=31 // pred_region
          %246 = dma.done [#allocation3], 128
        $region36: #{tpu_custom_call.1} parent=31 // pred_fallthru
          _
        %s247 = sand.u32 %s21, 1
        %s248 = scalar_lea.sflag [#allocation6], %s247
        %s249 = sand.u32 %s87, 1
        %s250 = smul.addr %s249, 32
        %s251 = scalar_lea.vmem [#allocation5], %s250
        // Predicated region
        $region37: #{tpu_custom_call.1} parent=31 // pred_check
          %p252 = pneg %p100
        $region38: #{tpu_custom_call.1} parent=31 // pred_check_branch
          %254 = sbr.rel (%p252) target = $region40
        $region39: #{tpu_custom_call.1} parent=31 // pred_region
          %256 = dma.done %s248, 512
        $region40: #{tpu_custom_call.1} parent=31 // pred_fallthru
          _
        %s257 = sand.u32 %s21, 1
        %s258 = scalar_lea.sflag [#allocation6], %s257
        %s259 = sand.u32 %s115, 1
        %s260 = scalar_lea.vmem [#allocation7], %s259
        // Predicated region
        $region41: #{tpu_custom_call.1} parent=31 // pred_check
          %p261 = pneg %p128
        $region42: #{tpu_custom_call.1} parent=31 // pred_check_branch
          %263 = sbr.rel (%p261) target = $region44
        $region43: #{tpu_custom_call.1} parent=31 // pred_region
          %265 = dma.done %s258, 16
        $region44: #{tpu_custom_call.1} parent=31 // pred_fallthru
          _
        %p266 = pneg %p70
        %p267 = pneg %p67
        %s268 = sand.u32 %s21, 1
        %s269 = scalar_lea.sflag [#allocation6], %s268
        %s270 = sand.u32 %s87, 1
        %s271 = smul.addr %s270, 32
        %s272 = scalar_lea.vmem [#allocation5], %s271
        %p273 = pneg %p100
        %p274 = pneg %p97
        %s275 = sand.u32 %s21, 1
        %s276 = scalar_lea.sflag [#allocation6], %s275
        %s277 = sand.u32 %s115, 1
        %s278 = scalar_lea.vmem [#allocation7], %s277
        %p279 = pneg %p128
        %p280 = pneg %p125
        %p281 = pneg %p158
        %p282 = pneg %p155
        %s283 = sand.u32 %s145, 1
        %s284 = scalar_lea.sflag [#allocation4], %s283
        %s285 = sand.u32 %s145, 1
        %s286 = smul.addr %s285, 8
        %s287 = scalar_lea.vmem [#allocation8], %s286
        %s288 = smul.u32 4, %s30
        %v289 = vld [vmem:[#allocation2] sm:$0xff]
        %v290 = vld [vmem:[%s251] sm:$0xff]
        %v291 = vld [vmem:[%s251 + $0x8] sm:$0xff]
        %v292 = vld [vmem:[%s251 + $0x10] sm:$0xff]
        %v293 = vld [vmem:[%s251 + $0x18] sm:$0xff]
        %v294 = vld [vmem:[%s260] sm:$0x1]
        %v296 = vperm.slane %v294, 0
        %vm298 = vcmask 261120
        %v300 = vsel %vm298, %v289, 0
        %302 = vmatpush.msra.mxu0 0.0
        %303 = vmatpush.msra.mxu0 0.0
        %304 = vmatpush.msra.mxu0 0.0
        %305 = vmatpush.msra.mxu0 0.0
        %306 = vmatpush.msra.mxu0 0.0
        %307 = vmatpush.msra.mxu0 0.0
        %308 = vmatpush.msra.mxu0 0.0
        %309 = vmatpush.msra.mxu0 0.0
        %310 = vmatpush.msra.mxu0 0.0
        %311 = vmatpush.msra.mxu0 0.0
        %312 = vmatpush.msra.mxu0 0.0
        %313 = vmatpush.msra.mxu0 0.0
        %314 = vmatpush.msra.mxu0 %v293
        %315 = vmatpush.msra.mxu0 %v292
        %316 = vmatpush.msra.mxu0 %v291
        %317 = vmatpush.msra.mxu0 %v290
        %318 = vmatmul.f32.gmra.mxu0 %v300
        %v319 = vpop.f32.mrf.mxu0
        %v320 = vadd.f32 %v296, %v319
        %321 = vdwg.mxu0
        %322 = vst.msk [vmem:[%s287] sm:$0xff] %vm298, %v320
        %s323 = sand.u32 %s145, 1
        %s324 = scalar_lea.sflag [#allocation4], %s323
        %s325 = sand.u32 %s145, 1
        %s326 = smul.addr %s325, 8
        %s327 = scalar_lea.vmem [#allocation8], %s326
        // Predicated region
        $region45: #{tpu_custom_call.1} parent=31 // pred_check
          %p328 = pneg %p155
        $region46: #{tpu_custom_call.1} parent=31 // pred_check_branch
          %330 = sbr.rel (%p328) target = $region48
        $region47: #{tpu_custom_call.1} parent=31 // pred_region
          %332 = vsyncadd %s324, 0
          %s333 = sadd.s32 %s28, %s27
          %s334 = sadd.s32 %s333, %s29
          %s335 = smul.addr %s334, 8
          %s336 = scalar_lea.hbm %s3, %s335
          %s338 = sshll.u32 %s327, 4
          %s339 = int_to_ptr.vmem [resolvable:$true] %s338
          %s340 = sshll.u32 %s336, 4
          %s341 = int_to_ptr.hbm [resolvable:$true] %s340
          %343 = dma.vmem_to_hbm [thread:$0]  %s339, 128, %s341, %s324
        $region48: #{tpu_custom_call.1} parent=31 // pred_fallthru
          _
      $region32: #{tpu_custom_call.1} parent=5 // pred_fallthru
        _
      %p344 = scmp.le.s32.totalorder 2, %s16
      // Predicated region
      $region49: #{tpu_custom_call.1} parent=5 // pred_check
        %p345 = pneg %p344
      $region50: #{tpu_custom_call.1} parent=5 // pred_check_branch
        %347 = sbr.rel (%p345) target = $region52
      $region51: #{tpu_custom_call.1} parent=5 // pred_region
        %s348 = ssub.s32 %s16, 2
        // Predicated region
        $region53: #{tpu_custom_call.1} parent=51 // pred_check
          %p349 = pneg %p161
        $region54: #{tpu_custom_call.1} parent=51 // pred_check_branch
          %351 = sbr.rel (%p349) target = $region56
        $region55: #{tpu_custom_call.1} parent=51 // pred_region
          %s352 = sand.u32 %s146, 1
          %s353 = scalar_lea.sflag [#allocation4], %s352
          %s354 = sand.u32 %s146, 1
          %s355 = smul.addr %s354, 8
          %s356 = scalar_lea.vmem [#allocation8], %s355
          %358 = dma.done %s353, 128
        $region56: #{tpu_custom_call.1} parent=51 // pred_fallthru
          _
      $region52: #{tpu_custom_call.1} parent=5 // pred_fallthru
        _
    $region6: #{tpu_custom_call.1} parent=1 // loop_footer
      %s20 = sadd.s32 1, %s16
    $region7: #{tpu_custom_call.1} parent=1 // loop_footer_branch
      %15 = sbr.rel target = $region3
    $region8: #{tpu_custom_call.1} parent=1 // loop_exit
      _
    %359 = vsyncpa [#allocation3], 1
    %s360 = scalar_lea.sflag [#allocation3], 1
    %361 = vsyncpa %s360, 1
    %362 = vsyncpa [#allocation6], 1
    %s363 = scalar_lea.sflag [#allocation6], 1
    %364 = vsyncpa %s363, 1
    %365 = vsyncpa [#allocation4], 1
    %s366 = scalar_lea.sflag [#allocation4], 1
    %367 = vsyncpa %s366, 1

</llo_original>
